<compile_context>
chip_gen: v7x
topology: tpu7x:2x2x1
jax: 0.10.0
libtpu: 0.0.40
codegen_flags: <defaults>
</compile_context>

<pallas_src>
from functools import partial

import numpy as np
import jax
import jax.numpy as jnp
from jax.experimental import pallas as pl
from jax.experimental.pallas import tpu as pltpu


# ----------------------------- Pallas kernel -------------------------------

def encoding_kernel(x_ref, w1_ref, b1_ref, w2_ref, b2_ref,
                    weff1_ref, weff2_ref, bias_ref, out_ref):
    # Synthetic policy model: 2-layer tanh MLP; its per-layer activations are
    # what get_activations() would have returned.
    # TODO(synk): the real module hooks an arbitrary policy.model via
    # get_activations(); here that model is a fixed 2-layer tanh MLP.
    x = x_ref[...].astype(jnp.bfloat16)                       # in-kernel bf16 cast
    h1 = jnp.tanh(                                            # f32 tanh (v5e-safe)
        jnp.dot(x, w1_ref[...], preferred_element_type=jnp.float32)
        + b1_ref[...])
    h1b = h1.astype(jnp.bfloat16)                             # (double-rounded h1,
    h2 = jnp.tanh(                                            #  covered by test tol)
        jnp.dot(h1b, w2_ref[...], preferred_element_type=jnp.float32)
        + b2_ref[...])
    h2b = h2.astype(jnp.bfloat16)
    # concat + column-select + standardize + project, folded & row-split:
    #   out = h1 @ Weff1 + h2 @ Weff2 + bias   (f32 accumulate, lane-dense out)
    acc = jnp.dot(h1b, weff1_ref[...], preferred_element_type=jnp.float32)
    acc = acc + jnp.dot(h2b, weff2_ref[...], preferred_element_type=jnp.float32)
    out_ref[...] = (acc + bias_ref[...]).astype(out_ref.dtype)  # bf16 store


# --------------------------- one-time param prep ----------------------------

def prepare_encoding_params(w1, b1, w2, b2, mu, std, weights, non_empty_idx,
                            *, lane=128):
    """Fold column-select + standardize + project into one affine map and
    pre-cast / pre-pad everything the kernel needs.  Call ONCE at setup."""
    OBS, H1 = w1.shape
    H2 = w2.shape[1]
    A = H1 + H2
    D = weights.shape[1]

    w_eff = jnp.zeros((A, D), dtype=jnp.float32)
    w_eff = w_eff.at[non_empty_idx, :].set(weights / std[:, None])
    bias_eff = (-(mu / std) @ weights).reshape(1, D)

    # Lane-dense output: zero-pad projection columns up to a multiple of 128.
    DP = max(lane, ((D + lane - 1) // lane) * lane)
    pad = DP - D
    w_eff1 = w_eff[:H1]
    w_eff2 = w_eff[H1:]
    if pad:
        w_eff1 = jnp.pad(w_eff1, ((0, 0), (0, pad)))
        w_eff2 = jnp.pad(w_eff2, ((0, 0), (0, pad)))
        bias_p = jnp.pad(bias_eff, ((0, 0), (0, pad)))
    else:
        bias_p = bias_eff

    return {
        "w1": w1.astype(jnp.bfloat16),
        "b1": b1.astype(jnp.float32),
        "w2": w2.astype(jnp.bfloat16),
        "b2": b2.astype(jnp.float32),
        "weff1": w_eff1.astype(jnp.bfloat16),
        "weff2": w_eff2.astype(jnp.bfloat16),
        "bias": bias_p.astype(jnp.float32),
    }


# ------------------------------- forward ------------------------------------

def _pick_row_tile(n):
    # N <= 2048: a single grid step (per-step overhead ~0.35us dominates on
    # 1-TC v5e/v6e; v7x's 2nd TC would only save tens of ns here).
    # Larger N: big tiles (<=4096 rows) to amortize step overhead while keeping
    # >=2 "parallel" steps so v7x can shard rows across its two TensorCores.
    if n <= 2048:
        return n
    tile = min(4096, (n // 2 // 8) * 8)
    while tile > 8 and n % tile:
        tile -= 8
    return tile if (tile > 0 and n % tile == 0) else n


@partial(jax.jit, static_argnames=("d_out",))
def encoding_forward(x, params, *, d_out):
    """Fused EncodingModel forward. x is f32 (N, OBS); returns bf16 (N, d_out)."""
    N, OBS = x.shape
    w1, b1 = params["w1"], params["b1"]
    w2, b2 = params["w2"], params["b2"]
    weff1, weff2, bias = params["weff1"], params["weff2"], params["bias"]
    H1 = w1.shape[1]
    H2 = w2.shape[1]
    DP = weff1.shape[1]

    tile_n = _pick_row_tile(N)
    grid = (N // tile_n,)
    full = lambda shape: pl.BlockSpec(shape, lambda i: (0, 0))

    out_p = pl.pallas_call(
        encoding_kernel,
        out_shape=jax.ShapeDtypeStruct((N, DP), jnp.bfloat16),
        grid=grid,
        in_specs=[
            pl.BlockSpec((tile_n, OBS), lambda i: (i, 0)),  # x     (f32, cast in-kernel)
            full((OBS, H1)),                                # w1    (bf16)
            full((1, H1)),                                  # b1    (f32)
            full((H1, H2)),                                 # w2    (bf16)
            full((1, H2)),                                  # b2    (f32)
            full((H1, DP)),                                 # Weff1 (bf16)
            full((H2, DP)),                                 # Weff2 (bf16)
            full((1, DP)),                                  # bias  (f32)
        ],
        out_specs=pl.BlockSpec((tile_n, DP), lambda i: (i, 0)),
        compiler_params=pltpu.CompilerParams(
            dimension_semantics=("parallel",)),
    )(x, w1, b1, w2, b2, weff1, weff2, bias)

    # Drop the lane-padding columns inside the same jit (fuses with consumers).
    return out_p[:, :d_out]


# ------------------------------ reference ----------------------------------

def reference_forward(x, w1, b1, w2, b2, mu, std, weights, non_empty_idx):
    """Pure-f32 JAX mirror of the PyTorch forward for verification."""
    h1 = jnp.tanh(x @ w1 + b1)
    h2 = jnp.tanh(h1 @ w2 + b2)
    acts = jnp.concatenate([h1, h2], axis=1)
    acts = acts[:, non_empty_idx]
    acts_scaled = (acts - mu) / std
    return acts_scaled @ weights


# --------------------------------- main -------------------------------------

if __name__ == "__main__":
    # Small shapes consistent with the module: x is [n_observations, obs_size].
    N, OBS, H1, H2, D = 256, 32, 32, 32, 16
    A = H1 + H2

    key = jax.random.PRNGKey(0)
    ks = jax.random.split(key, 8)

    x = jax.random.normal(ks[0], (N, OBS), dtype=jnp.float32)

    # Synthetic policy-model parameters (deterministic).
    w1 = jax.random.normal(ks[1], (OBS, H1), dtype=jnp.float32) * 0.2
    b1 = jax.random.normal(ks[2], (1, H1), dtype=jnp.float32) * 0.1
    w2 = jax.random.normal(ks[3], (H1, H2), dtype=jnp.float32) * 0.2
    b2 = jax.random.normal(ks[4], (1, H2), dtype=jnp.float32) * 0.1

    # non_empty: drop every 4th activation column (deterministic mask).
    non_empty = np.ones(A, dtype=bool)
    non_empty[::4] = False
    non_empty_idx = np.nonzero(non_empty)[0]
    S = int(non_empty_idx.size)

    # scaler.mean_, scaler.scale_, coefs (deterministic synthetic values).
    mu = jax.random.normal(ks[5], (S,), dtype=jnp.float32) * 0.05
    std = jnp.abs(jax.random.normal(ks[6], (S,), dtype=jnp.float32)) + 0.5
    weights = jax.random.normal(ks[7], (S, D), dtype=jnp.float32) * 0.3

    # One-time weight prep (hoisted out of the per-call path).
    params = prepare_encoding_params(w1, b1, w2, b2, mu, std, weights,
                                     jnp.asarray(non_empty_idx))
    params = jax.block_until_ready(params)

    out = encoding_forward(x, params, d_out=D)
    out = jax.block_until_ready(out)

    ref = reference_forward(x, w1, b1, w2, b2, mu, std, weights,
                            jnp.asarray(non_empty_idx))
    # Tolerance budget covers bf16 streaming of the MXU operands, the
    # double-rounded h1 (reused for layer 2 and the projection) AND the bf16
    # result store; accumulation, biases and tanh remain f32 inside the kernel.
    np.testing.assert_allclose(np.asarray(out).astype(np.float32),
                               np.asarray(ref),
                               rtol=5e-2, atol=8e-2)

    print("KERNEL_OK")
</pallas_src>

<mosaic_0001>
module attributes {stable_mosaic.version = 11 : i64} {
  func.func @encoding_kernel(%arg0: i32, %arg1: memref<256x32xf32, #tpu.memory_space<vmem>>, %arg2: memref<32x32xbf16, #tpu.memory_space<vmem>>, %arg3: memref<1x32xf32, #tpu.memory_space<vmem>>, %arg4: memref<32x32xbf16, #tpu.memory_space<vmem>>, %arg5: memref<1x32xf32, #tpu.memory_space<vmem>>, %arg6: memref<32x128xbf16, #tpu.memory_space<vmem>>, %arg7: memref<32x128xbf16, #tpu.memory_space<vmem>>, %arg8: memref<1x128xf32, #tpu.memory_space<vmem>>, %arg9: memref<256x128xbf16, #tpu.memory_space<vmem>>) attributes {dimension_semantics = [#tpu.dimension_semantics<parallel>], iteration_bounds = array<i64: 1>, scalar_prefetch = 0 : i64, scratch_operands = 0 : i64, tpu.core_type = #tpu.core_type<tc>, window_params = [{transform_indices = @transform_0, window_bounds = array<i64: 256, 32>}, {pipeline_mode = #tpu.pipeline_mode<synchronous>, transform_indices = @transform_1, window_bounds = array<i64: 32, 32>}, {pipeline_mode = #tpu.pipeline_mode<synchronous>, transform_indices = @transform_2, window_bounds = array<i64: 1, 32>}, {pipeline_mode = #tpu.pipeline_mode<synchronous>, transform_indices = @transform_3, window_bounds = array<i64: 32, 32>}, {pipeline_mode = #tpu.pipeline_mode<synchronous>, transform_indices = @transform_4, window_bounds = array<i64: 1, 32>}, {pipeline_mode = #tpu.pipeline_mode<synchronous>, transform_indices = @transform_5, window_bounds = array<i64: 32, 128>}, {pipeline_mode = #tpu.pipeline_mode<synchronous>, transform_indices = @transform_6, window_bounds = array<i64: 32, 128>}, {pipeline_mode = #tpu.pipeline_mode<synchronous>, transform_indices = @transform_7, window_bounds = array<i64: 1, 128>}, {transform_indices = @transform_8, window_bounds = array<i64: 256, 128>}]} {
    %c0 = arith.constant 0 : index
    %c0_0 = arith.constant 0 : index
    %0 = vector.load %arg1[%c0, %c0_0] : memref<256x32xf32, #tpu.memory_space<vmem>>, vector<256x32xf32>
    %1 = arith.truncf %0 : vector<256x32xf32> to vector<256x32xbf16>
    %c0_1 = arith.constant 0 : index
    %c0_2 = arith.constant 0 : index
    %2 = vector.load %arg2[%c0_1, %c0_2] : memref<32x32xbf16, #tpu.memory_space<vmem>>, vector<32x32xbf16>
    %cst = arith.constant dense<0.000000e+00> : vector<256x32xf32>
    %3 = tpu.matmul %1, %2, %cst {dimension_numbers = #tpu.dot_dimension_numbers<[1], [0], [0], [1], [0, 0, 1, 1], [], []>} : vector<256x32xbf16>, vector<32x32xbf16>, vector<256x32xf32> -> vector<256x32xf32>
    %c0_3 = arith.constant 0 : index
    %c0_4 = arith.constant 0 : index
    %4 = vector.load %arg3[%c0_3, %c0_4] : memref<1x32xf32, #tpu.memory_space<vmem>>, vector<1x32xf32>
    %5 = vector.broadcast %4 : vector<1x32xf32> to vector<256x32xf32>
    %6 = arith.addf %3, %5 : vector<256x32xf32>
    %7 = math.tanh %6 : vector<256x32xf32>
    %8 = arith.truncf %7 : vector<256x32xf32> to vector<256x32xbf16>
    %c0_5 = arith.constant 0 : index
    %c0_6 = arith.constant 0 : index
    %9 = vector.load %arg4[%c0_5, %c0_6] : memref<32x32xbf16, #tpu.memory_space<vmem>>, vector<32x32xbf16>
    %cst_7 = arith.constant dense<0.000000e+00> : vector<256x32xf32>
    %10 = tpu.matmul %8, %9, %cst_7 {dimension_numbers = #tpu.dot_dimension_numbers<[1], [0], [0], [1], [0, 0, 1, 1], [], []>} : vector<256x32xbf16>, vector<32x32xbf16>, vector<256x32xf32> -> vector<256x32xf32>
    %c0_8 = arith.constant 0 : index
    %c0_9 = arith.constant 0 : index
    %11 = vector.load %arg5[%c0_8, %c0_9] : memref<1x32xf32, #tpu.memory_space<vmem>>, vector<1x32xf32>
    %12 = vector.broadcast %11 : vector<1x32xf32> to vector<256x32xf32>
    %13 = arith.addf %10, %12 : vector<256x32xf32>
    %14 = math.tanh %13 : vector<256x32xf32>
    %15 = arith.truncf %14 : vector<256x32xf32> to vector<256x32xbf16>
    %c0_10 = arith.constant 0 : index
    %c0_11 = arith.constant 0 : index
    %16 = vector.load %arg6[%c0_10, %c0_11] : memref<32x128xbf16, #tpu.memory_space<vmem>>, vector<32x128xbf16>
    %cst_12 = arith.constant dense<0.000000e+00> : vector<256x128xf32>
    %17 = tpu.matmul %8, %16, %cst_12 {dimension_numbers = #tpu.dot_dimension_numbers<[1], [0], [0], [1], [0, 0, 1, 1], [], []>} : vector<256x32xbf16>, vector<32x128xbf16>, vector<256x128xf32> -> vector<256x128xf32>
    %c0_13 = arith.constant 0 : index
    %c0_14 = arith.constant 0 : index
    %18 = vector.load %arg7[%c0_13, %c0_14] : memref<32x128xbf16, #tpu.memory_space<vmem>>, vector<32x128xbf16>
    %cst_15 = arith.constant dense<0.000000e+00> : vector<256x128xf32>
    %19 = tpu.matmul %15, %18, %cst_15 {dimension_numbers = #tpu.dot_dimension_numbers<[1], [0], [0], [1], [0, 0, 1, 1], [], []>} : vector<256x32xbf16>, vector<32x128xbf16>, vector<256x128xf32> -> vector<256x128xf32>
    %20 = arith.addf %17, %19 : vector<256x128xf32>
    %c0_16 = arith.constant 0 : index
    %c0_17 = arith.constant 0 : index
    %21 = vector.load %arg8[%c0_16, %c0_17] : memref<1x128xf32, #tpu.memory_space<vmem>>, vector<1x128xf32>
    %22 = vector.broadcast %21 : vector<1x128xf32> to vector<256x128xf32>
    %23 = arith.addf %20, %22 : vector<256x128xf32>
    %24 = arith.truncf %23 : vector<256x128xf32> to vector<256x128xbf16>
    %c0_18 = arith.constant 0 : index
    %c0_19 = arith.constant 0 : index
    %25 = vector.load %arg9[%c0_18, %c0_19] : memref<256x128xbf16, #tpu.memory_space<vmem>>, vector<256x128xbf16>
    tpu.vector_store %arg9[%c0_18, %c0_19], %24 {strides = array<i32>} : memref<256x128xbf16, #tpu.memory_space<vmem>>, vector<256x128xbf16>,
    return
  }
  func.func @transform_0(%arg0: i32) -> (i32, i32) {
    %c0_i32 = arith.constant 0 : i32
    %c0_i32_0 = arith.constant 0 : i32
    return %arg0, %c0_i32 : i32, i32
  }
  func.func @transform_1(%arg0: i32) -> (i32, i32) {
    %c0_i32 = arith.constant 0 : i32
    %c0_i32_0 = arith.constant 0 : i32
    %c0_i32_1 = arith.constant 0 : i32
    return %c0_i32, %c0_i32_0 : i32, i32
  }
  func.func @transform_2(%arg0: i32) -> (i32, i32) {
    %c0_i32 = arith.constant 0 : i32
    %c0_i32_0 = arith.constant 0 : i32
    %c0_i32_1 = arith.constant 0 : i32
    return %c0_i32, %c0_i32_0 : i32, i32
  }
  func.func @transform_3(%arg0: i32) -> (i32, i32) {
    %c0_i32 = arith.constant 0 : i32
    %c0_i32_0 = arith.constant 0 : i32
    %c0_i32_1 = arith.constant 0 : i32
    return %c0_i32, %c0_i32_0 : i32, i32
  }
  func.func @transform_4(%arg0: i32) -> (i32, i32) {
    %c0_i32 = arith.constant 0 : i32
    %c0_i32_0 = arith.constant 0 : i32
    %c0_i32_1 = arith.constant 0 : i32
    return %c0_i32, %c0_i32_0 : i32, i32
  }
  func.func @transform_5(%arg0: i32) -> (i32, i32) {
    %c0_i32 = arith.constant 0 : i32
    %c0_i32_0 = arith.constant 0 : i32
    %c0_i32_1 = arith.constant 0 : i32
    return %c0_i32, %c0_i32_0 : i32, i32
  }
  func.func @transform_6(%arg0: i32) -> (i32, i32) {
    %c0_i32 = arith.constant 0 : i32
    %c0_i32_0 = arith.constant 0 : i32
    %c0_i32_1 = arith.constant 0 : i32
    return %c0_i32, %c0_i32_0 : i32, i32
  }
  func.func @transform_7(%arg0: i32) -> (i32, i32) {
    %c0_i32 = arith.constant 0 : i32
    %c0_i32_0 = arith.constant 0 : i32
    %c0_i32_1 = arith.constant 0 : i32
    return %c0_i32, %c0_i32_0 : i32, i32
  }
  func.func @transform_8(%arg0: i32) -> (i32, i32) {
    %c0_i32 = arith.constant 0 : i32
    %c0_i32_0 = arith.constant 0 : i32
    return %arg0, %c0_i32 : i32, i32
  }
}

</mosaic_0001>

<llo_original>
// kernel: encoding_forward.1
$region0: #{encoding_forward.1}
  #allocation0 [shape = 'u32[]', space=smem, size = 0x4, offset = 0x4, fixed_abs, tag = 'smem constant byte address 0x4 - core index']
  #allocation1 [shape = 'u32[144,128]{1,0:T(1,128)}', space=vmem, size = 0x12000, scoped, tag = 'internal scratch']
  %s0 = inlined_call_operand.vmem [shape: f32[256,32], index: 0, kind: input, shape index: {}]
  %s1 = inlined_call_operand.vmem [shape: bf16[32,32], index: 1, kind: input, shape index: {}]
  %s2 = inlined_call_operand.vmem [shape: f32[1,32], index: 2, kind: input, shape index: {}]
  %s3 = inlined_call_operand.vmem [shape: bf16[32,32], index: 3, kind: input, shape index: {}]
  %s4 = inlined_call_operand.vmem [shape: f32[1,32], index: 4, kind: input, shape index: {}]
  %s5 = inlined_call_operand.vmem [shape: bf16[32,128], index: 5, kind: input, shape index: {}]
  %s6 = inlined_call_operand.vmem [shape: bf16[32,128], index: 6, kind: input, shape index: {}]
  %s7 = inlined_call_operand.vmem [shape: f32[1,128], index: 7, kind: input, shape index: {}]
  %s8 = inlined_call_operand.vmem [shape: bf16[256,128], index: 8, kind: output, shape index: {}]
  %s9 = sld [smem:[#allocation0]]
  $region42: #{encoding_forward.1} parent=0
    _
  %s11 = ssub.s32 1, %s9
  %s12 = scalar_select 0, %s11, %s9
  // Predicated region
  $region2: #{encoding_forward.1} parent=0 // pred_check
    _
  $region3: #{encoding_forward.1} parent=0 // pred_check_branch
    %14 = sbr.rel (0) target = $region5
  $region4: #{encoding_forward.1} parent=0 // pred_region
    _
  $region5: #{encoding_forward.1} parent=0 // pred_fallthru
    _
  // Predicated region
  $region6: #{encoding_forward.1} parent=0 // pred_check
    _
  $region7: #{encoding_forward.1} parent=0 // pred_check_branch
    %16 = sbr.rel (0) target = $region9
  $region8: #{encoding_forward.1} parent=0 // pred_region
    _
  $region9: #{encoding_forward.1} parent=0 // pred_fallthru
    _
  // Predicated region
  $region10: #{encoding_forward.1} parent=0 // pred_check
    _
  $region11: #{encoding_forward.1} parent=0 // pred_check_branch
    %18 = sbr.rel (0) target = $region13
  $region12: #{encoding_forward.1} parent=0 // pred_region
    _
  $region13: #{encoding_forward.1} parent=0 // pred_fallthru
    _
  // Predicated region
  $region14: #{encoding_forward.1} parent=0 // pred_check
    _
  $region15: #{encoding_forward.1} parent=0 // pred_check_branch
    %20 = sbr.rel (0) target = $region17
  $region16: #{encoding_forward.1} parent=0 // pred_region
    _
  $region17: #{encoding_forward.1} parent=0 // pred_fallthru
    _
  // Predicated region
  $region18: #{encoding_forward.1} parent=0 // pred_check
    _
  $region19: #{encoding_forward.1} parent=0 // pred_check_branch
    %22 = sbr.rel (0) target = $region21
  $region20: #{encoding_forward.1} parent=0 // pred_region
    _
  $region21: #{encoding_forward.1} parent=0 // pred_fallthru
    _
  // Predicated region
  $region22: #{encoding_forward.1} parent=0 // pred_check
    _
  $region23: #{encoding_forward.1} parent=0 // pred_check_branch
    %24 = sbr.rel (0) target = $region25
  $region24: #{encoding_forward.1} parent=0 // pred_region
    _
  $region25: #{encoding_forward.1} parent=0 // pred_fallthru
    _
  // Predicated region
  $region26: #{encoding_forward.1} parent=0 // pred_check
    _
  $region27: #{encoding_forward.1} parent=0 // pred_check_branch
    %26 = sbr.rel (0) target = $region29
  $region28: #{encoding_forward.1} parent=0 // pred_region
    _
  $region29: #{encoding_forward.1} parent=0 // pred_fallthru
    _
  // Predicated region
  $region30: #{encoding_forward.1} parent=0 // pred_check
    _
  $region31: #{encoding_forward.1} parent=0 // pred_check_branch
    %28 = sbr.rel (0) target = $region33
  $region32: #{encoding_forward.1} parent=0 // pred_region
    _
  $region33: #{encoding_forward.1} parent=0 // pred_fallthru
    _
  %v30 = vld [vmem:[%s0] sm:$0xff]
  %v31 = vld [vmem:[%s0 + $0x8] sm:$0xff]
  %v32 = vld [vmem:[%s0 + $0x10] sm:$0xff]
  %v33 = vld [vmem:[%s0 + $0x18] sm:$0xff]
  %v34 = vld [vmem:[%s0 + $0x20] sm:$0xff]
  %v35 = vld [vmem:[%s0 + $0x28] sm:$0xff]
  %v36 = vld [vmem:[%s0 + $0x30] sm:$0xff]
  %v37 = vld [vmem:[%s0 + $0x38] sm:$0xff]
  %v38 = vld [vmem:[%s0 + $0x40] sm:$0xff]
  %v39 = vld [vmem:[%s0 + $0x48] sm:$0xff]
  %v40 = vld [vmem:[%s0 + $0x50] sm:$0xff]
  %v41 = vld [vmem:[%s0 + $0x58] sm:$0xff]
  %v42 = vld [vmem:[%s0 + $0x60] sm:$0xff]
  %v43 = vld [vmem:[%s0 + $0x68] sm:$0xff]
  %v44 = vld [vmem:[%s0 + $0x70] sm:$0xff]
  %v45 = vld [vmem:[%s0 + $0x78] sm:$0xff]
  %v46 = vld [vmem:[%s0 + $0x80] sm:$0xff]
  %v47 = vld [vmem:[%s0 + $0x88] sm:$0xff]
  %v48 = vld [vmem:[%s0 + $0x90] sm:$0xff]
  %v49 = vld [vmem:[%s0 + $0x98] sm:$0xff]
  %v50 = vld [vmem:[%s0 + $0xa0] sm:$0xff]
  %v51 = vld [vmem:[%s0 + $0xa8] sm:$0xff]
  %v52 = vld [vmem:[%s0 + $0xb0] sm:$0xff]
  %v53 = vld [vmem:[%s0 + $0xb8] sm:$0xff]
  %v54 = vld [vmem:[%s0 + $0xc0] sm:$0xff]
  %v55 = vld [vmem:[%s0 + $0xc8] sm:$0xff]
  %v56 = vld [vmem:[%s0 + $0xd0] sm:$0xff]
  %v57 = vld [vmem:[%s0 + $0xd8] sm:$0xff]
  %v58 = vld [vmem:[%s0 + $0xe0] sm:$0xff]
  %v59 = vld [vmem:[%s0 + $0xe8] sm:$0xff]
  %v60 = vld [vmem:[%s0 + $0xf0] sm:$0xff]
  %v61 = vld [vmem:[%s0 + $0xf8] sm:$0xff]
  %v62 = vpack.c.bf16 %v31, %v30
  %v63 = vpack.c.bf16 %v33, %v32
  %v64 = vpack.c.bf16 %v35, %v34
  %v65 = vpack.c.bf16 %v37, %v36
  %v66 = vpack.c.bf16 %v39, %v38
  %v67 = vpack.c.bf16 %v41, %v40
  %v68 = vpack.c.bf16 %v43, %v42
  %v69 = vpack.c.bf16 %v45, %v44
  %v70 = vpack.c.bf16 %v47, %v46
  %v71 = vpack.c.bf16 %v49, %v48
  %v72 = vpack.c.bf16 %v51, %v50
  %v73 = vpack.c.bf16 %v53, %v52
  %v74 = vpack.c.bf16 %v55, %v54
  %v75 = vpack.c.bf16 %v57, %v56
  %v76 = vpack.c.bf16 %v59, %v58
  %v77 = vpack.c.bf16 %v61, %v60
  %v78 = vld [vmem:[%s1] sm:$0xf]
  %v79 = vld [vmem:[%s1 + $0x4] sm:$0xf]
  %v80 = vld [vmem:[%s1 + $0x8] sm:$0xf]
  %v81 = vld [vmem:[%s1 + $0xc] sm:$0xf]
  %v82 = vld [vmem:[%s2] sm:$0x1]
  %v84 = vlaneseq
  %v85 = vshrl.u32 %v84, 7
  %v86 = vsub.s32 0, %v85
  %v87 = vrot.slane %v82, %v86
  %v93 = vunpack.c.l.b16 %v78
  %v94 = vunpack.c.l.b16 %v79
  %v95 = vunpack.c.l.b16 %v80
  %v96 = vunpack.c.l.b16 %v81
  %v97 = vpack.c.b16 %v94, %v93
  %v98 = vpack.c.b16 %v96, %v95
  %vm101 = vcmask 261120
  %v103 = vsel %vm101, %v62, 0
  %v106 = vsel %vm101, %v63, 0
  %v109 = vsel %vm101, %v64, 0
  %v112 = vsel %vm101, %v65, 0
  %v115 = vsel %vm101, %v66, 0
  %v118 = vsel %vm101, %v67, 0
  %v121 = vsel %vm101, %v68, 0
  %v124 = vsel %vm101, %v69, 0
  %v127 = vsel %vm101, %v70, 0
  %v130 = vsel %vm101, %v71, 0
  %v133 = vsel %vm101, %v72, 0
  %v136 = vsel %vm101, %v73, 0
  %v139 = vsel %vm101, %v74, 0
  %v142 = vsel %vm101, %v75, 0
  %v145 = vsel %vm101, %v76, 0
  %v148 = vsel %vm101, %v77, 0
  %150 = vmatprep.subr.bf16.mxu0 0
  %151 = vmatpush1.bf16.msra.mxu0 %v97
  %152 = vmatprep.subr.bf16.mxu0 0
  %153 = vmatpush1.bf16.msra.mxu0 %v98
  %154 = vmatprep.subr.bf16.mxu0 0
  %155 = vmatpush1.bf16.msra.mxu0 0
  %156 = vmatprep.subr.bf16.mxu0 0
  %157 = vmatpush1.bf16.msra.mxu0 0
  %158 = vmatprep.subr.bf16.mxu0 0
  %159 = vmatpush1.bf16.msra.mxu0 0
  %160 = vmatprep.subr.bf16.mxu0 0
  %161 = vmatpush1.bf16.msra.mxu0 0
  %162 = vmatprep.subr.bf16.mxu0 0
  %163 = vmatpush1.bf16.msra.mxu0 0
  %164 = vmatprep.subr.bf16.mxu0 0
  %165 = vmatpush1.bf16.msra.mxu0 0
  %166 = vmatprep.subr.bf16.mxu0 0
  %167 = vmatpush1.bf16.msra.mxu0 0
  %168 = vmatprep.subr.bf16.mxu0 0
  %169 = vmatpush1.bf16.msra.mxu0 0
  %170 = vmatprep.subr.bf16.mxu0 0
  %171 = vmatpush1.bf16.msra.mxu0 0
  %172 = vmatprep.subr.bf16.mxu0 0
  %173 = vmatpush1.bf16.msra.mxu0 0
  %174 = vmatprep.subr.bf16.mxu0 0
  %175 = vmatpush1.bf16.msra.mxu0 0
  %176 = vmatprep.subr.bf16.mxu0 0
  %177 = vmatpush1.bf16.msra.mxu0 0
  %178 = vmatprep.subr.bf16.mxu0 0
  %179 = vmatpush1.bf16.msra.mxu0 0
  %180 = vmatprep.subr.bf16.mxu0 0
  %181 = vmatpush1.bf16.msra.mxu0 0
  %182 = vmatprep.mubr.bf16.mxu0 0
  %183 = vmatmul.mubr.bf16.gmra.mrb[0].mxu0 %v103
  %v184 = vpop.f32.mrb[0].mxu0
  %v185 = vadd.f32 %v87, %v184
  %v186 = vpop.f32.mrb[0].mxu0
  %v187 = vpop.f32.mrb[0].mxu0
  %v188 = vadd.f32 %v87, %v187
  %v189 = vpop.f32.mrb[0].mxu0
  %190 = vmatprep.mubr.bf16.mxu0 0
  %191 = vmatmul.mubr.bf16.gmra.mrb[0].mxu0 %v106
  %v192 = vpop.f32.mrb[0].mxu0
  %v193 = vadd.f32 %v87, %v192
  %v194 = vpop.f32.mrb[0].mxu0
  %v195 = vpop.f32.mrb[0].mxu0
  %v196 = vadd.f32 %v87, %v195
  %v197 = vpop.f32.mrb[0].mxu0
  %198 = vmatprep.mubr.bf16.mxu0 0
  %199 = vmatmul.mubr.bf16.gmra.mrb[0].mxu0 %v109
  %v200 = vpop.f32.mrb[0].mxu0
  %v201 = vadd.f32 %v87, %v200
  %v202 = vpop.f32.mrb[0].mxu0
  %v203 = vpop.f32.mrb[0].mxu0
  %v204 = vadd.f32 %v87, %v203
  %v205 = vpop.f32.mrb[0].mxu0
  %206 = vmatprep.mubr.bf16.mxu0 0
  %207 = vmatmul.mubr.bf16.gmra.mrb[0].mxu0 %v112
  %v208 = vpop.f32.mrb[0].mxu0
  %v209 = vadd.f32 %v87, %v208
  %v210 = vpop.f32.mrb[0].mxu0
  %v211 = vpop.f32.mrb[0].mxu0
  %v212 = vadd.f32 %v87, %v211
  %v213 = vpop.f32.mrb[0].mxu0
  %214 = vmatprep.mubr.bf16.mxu0 0
  %215 = vmatmul.mubr.bf16.gmra.mrb[0].mxu0 %v115
  %v216 = vpop.f32.mrb[0].mxu0
  %v217 = vadd.f32 %v87, %v216
  %v218 = vpop.f32.mrb[0].mxu0
  %v219 = vpop.f32.mrb[0].mxu0
  %v220 = vadd.f32 %v87, %v219
  %v221 = vpop.f32.mrb[0].mxu0
  %222 = vmatprep.mubr.bf16.mxu0 0
  %223 = vmatmul.mubr.bf16.gmra.mrb[0].mxu0 %v118
  %v224 = vpop.f32.mrb[0].mxu0
  %v225 = vadd.f32 %v87, %v224
  %v226 = vpop.f32.mrb[0].mxu0
  %v227 = vpop.f32.mrb[0].mxu0
  %v228 = vadd.f32 %v87, %v227
  %v229 = vpop.f32.mrb[0].mxu0
  %230 = vmatprep.mubr.bf16.mxu0 0
  %231 = vmatmul.mubr.bf16.gmra.mrb[0].mxu0 %v121
  %v232 = vpop.f32.mrb[0].mxu0
  %v233 = vadd.f32 %v87, %v232
  %v234 = vpop.f32.mrb[0].mxu0
  %v235 = vpop.f32.mrb[0].mxu0
  %v236 = vadd.f32 %v87, %v235
  %v237 = vpop.f32.mrb[0].mxu0
  %238 = vmatprep.mubr.bf16.mxu0 0
  %239 = vmatmul.mubr.bf16.gmra.mrb[0].mxu0 %v124
  %v240 = vpop.f32.mrb[0].mxu0
  %v241 = vadd.f32 %v87, %v240
  %v242 = vpop.f32.mrb[0].mxu0
  %v243 = vpop.f32.mrb[0].mxu0
  %v244 = vadd.f32 %v87, %v243
  %v245 = vpop.f32.mrb[0].mxu0
  %246 = vmatprep.mubr.bf16.mxu0 0
  %247 = vmatmul.mubr.bf16.gmra.mrb[0].mxu0 %v127
  %v248 = vpop.f32.mrb[0].mxu0
  %v249 = vadd.f32 %v87, %v248
  %v250 = vpop.f32.mrb[0].mxu0
  %v251 = vpop.f32.mrb[0].mxu0
  %v252 = vadd.f32 %v87, %v251
  %v253 = vpop.f32.mrb[0].mxu0
  %254 = vmatprep.mubr.bf16.mxu0 0
  %255 = vmatmul.mubr.bf16.gmra.mrb[0].mxu0 %v130
  %v256 = vpop.f32.mrb[0].mxu0
  %v257 = vadd.f32 %v87, %v256
  %v258 = vpop.f32.mrb[0].mxu0
  %v259 = vpop.f32.mrb[0].mxu0
  %v260 = vadd.f32 %v87, %v259
  %v261 = vpop.f32.mrb[0].mxu0
  %262 = vmatprep.mubr.bf16.mxu0 0
  %263 = vmatmul.mubr.bf16.gmra.mrb[0].mxu0 %v133
  %v264 = vpop.f32.mrb[0].mxu0
  %v265 = vadd.f32 %v87, %v264
  %v266 = vpop.f32.mrb[0].mxu0
  %v267 = vpop.f32.mrb[0].mxu0
  %v268 = vadd.f32 %v87, %v267
  %v269 = vpop.f32.mrb[0].mxu0
  %270 = vmatprep.mubr.bf16.mxu0 0
  %271 = vmatmul.mubr.bf16.gmra.mrb[0].mxu0 %v136
  %v272 = vpop.f32.mrb[0].mxu0
  %v273 = vadd.f32 %v87, %v272
  %v274 = vpop.f32.mrb[0].mxu0
  %v275 = vpop.f32.mrb[0].mxu0
  %v276 = vadd.f32 %v87, %v275
  %v277 = vpop.f32.mrb[0].mxu0
  %278 = vmatprep.mubr.bf16.mxu0 0
  %279 = vmatmul.mubr.bf16.gmra.mrb[0].mxu0 %v139
  %v280 = vpop.f32.mrb[0].mxu0
  %v281 = vadd.f32 %v87, %v280
  %v282 = vpop.f32.mrb[0].mxu0
  %v283 = vpop.f32.mrb[0].mxu0
  %v284 = vadd.f32 %v87, %v283
  %v285 = vpop.f32.mrb[0].mxu0
  %286 = vmatprep.mubr.bf16.mxu0 0
  %287 = vmatmul.mubr.bf16.gmra.mrb[0].mxu0 %v142
  %v288 = vpop.f32.mrb[0].mxu0
  %v289 = vadd.f32 %v87, %v288
  %v290 = vpop.f32.mrb[0].mxu0
  %v291 = vpop.f32.mrb[0].mxu0
  %v292 = vadd.f32 %v87, %v291
  %v293 = vpop.f32.mrb[0].mxu0
  %294 = vmatprep.mubr.bf16.mxu0 0
  %295 = vmatmul.mubr.bf16.gmra.mrb[0].mxu0 %v145
  %v296 = vpop.f32.mrb[0].mxu0
  %v297 = vadd.f32 %v87, %v296
  %v298 = vpop.f32.mrb[0].mxu0
  %v299 = vpop.f32.mrb[0].mxu0
  %v300 = vadd.f32 %v87, %v299
  %v301 = vpop.f32.mrb[0].mxu0
  %302 = vmatprep.mubr.bf16.mxu0 0
  %303 = vmatmul.mubr.bf16.gmra.mrb[0].mxu0 %v148
  %v304 = vpop.f32.mrb[0].mxu0
  %v305 = vadd.f32 %v87, %v304
  %v306 = vpop.f32.mrb[0].mxu0
  %v307 = vpop.f32.mrb[0].mxu0
  %v308 = vadd.f32 %v87, %v307
  %v309 = vpop.f32.mrb[0].mxu0
  %310 = vdwg.mxu0
  %v311 = vtanh.pop %v185
  %v312 = vtanh.pop %v188
  %v313 = vtanh.pop %v193
  %v314 = vtanh.pop %v196
  %v315 = vtanh.pop %v201
  %v316 = vtanh.pop %v204
  %v317 = vtanh.pop %v209
  %v318 = vtanh.pop %v212
  %v319 = vtanh.pop %v217
  %v320 = vtanh.pop %v220
  %v321 = vtanh.pop %v225
  %v322 = vtanh.pop %v228
  %v323 = vtanh.pop %v233
  %v324 = vtanh.pop %v236
  %v325 = vtanh.pop %v241
  %v326 = vtanh.pop %v244
  %v327 = vtanh.pop %v249
  %v328 = vtanh.pop %v252
  %v329 = vtanh.pop %v257
  %v330 = vtanh.pop %v260
  %v331 = vtanh.pop %v265
  %v332 = vtanh.pop %v268
  %v333 = vtanh.pop %v273
  %v334 = vtanh.pop %v276
  %v335 = vtanh.pop %v281
  %v336 = vtanh.pop %v284
  %v337 = vtanh.pop %v289
  %v338 = vtanh.pop %v292
  %v339 = vtanh.pop %v297
  %v340 = vtanh.pop %v300
  %v341 = vtanh.pop %v305
  %v342 = vtanh.pop %v308
  %v343 = vpack.c.bf16 %v312, %v311
  %v344 = vpack.c.bf16 %v314, %v313
  %v345 = vpack.c.bf16 %v316, %v315
  %v346 = vpack.c.bf16 %v318, %v317
  %v347 = vpack.c.bf16 %v320, %v319
  %v348 = vpack.c.bf16 %v322, %v321
  %v349 = vpack.c.bf16 %v324, %v323
  %v350 = vpack.c.bf16 %v326, %v325
  %v351 = vpack.c.bf16 %v328, %v327
  %v352 = vpack.c.bf16 %v330, %v329
  %v353 = vpack.c.bf16 %v332, %v331
  %v354 = vpack.c.bf16 %v334, %v333
  %v355 = vpack.c.bf16 %v336, %v335
  %v356 = vpack.c.bf16 %v338, %v337
  %v357 = vpack.c.bf16 %v340, %v339
  %v358 = vpack.c.bf16 %v342, %v341
  %v359 = vld [vmem:[%s3] sm:$0xf]
  %v360 = vld [vmem:[%s3 + $0x4] sm:$0xf]
  %v361 = vld [vmem:[%s3 + $0x8] sm:$0xf]
  %v362 = vld [vmem:[%s3 + $0xc] sm:$0xf]
  %v363 = vld [vmem:[%s4] sm:$0x1]
  %v365 = vlaneseq
  %v366 = vshrl.u32 %v365, 7
  %v367 = vsub.s32 0, %v366
  %v368 = vrot.slane %v363, %v367
  %v374 = vunpack.c.l.b16 %v359
  %v375 = vunpack.c.l.b16 %v360
  %v376 = vunpack.c.l.b16 %v361
  %v377 = vunpack.c.l.b16 %v362
  %v378 = vpack.c.b16 %v375, %v374
  %v379 = vpack.c.b16 %v377, %v376
  %v383 = vsel %vm101, %v343, 0
  %v386 = vsel %vm101, %v344, 0
  %v389 = vsel %vm101, %v345, 0
  %v392 = vsel %vm101, %v346, 0
  %v395 = vsel %vm101, %v347, 0
  %v398 = vsel %vm101, %v348, 0
  %v401 = vsel %vm101, %v349, 0
  %v404 = vsel %vm101, %v350, 0
  %v407 = vsel %vm101, %v351, 0
  %v410 = vsel %vm101, %v352, 0
  %v413 = vsel %vm101, %v353, 0
  %v416 = vsel %vm101, %v354, 0
  %v419 = vsel %vm101, %v355, 0
  %v422 = vsel %vm101, %v356, 0
  %v425 = vsel %vm101, %v357, 0
  %v428 = vsel %vm101, %v358, 0
  %430 = vmatprep.subr.bf16.mxu0 0
  %431 = vmatpush1.bf16.msra.mxu0 %v378
  %432 = vmatprep.subr.bf16.mxu0 0
  %433 = vmatpush1.bf16.msra.mxu0 %v379
  %434 = vmatprep.subr.bf16.mxu0 0
  %435 = vmatpush1.bf16.msra.mxu0 0
  %436 = vmatprep.subr.bf16.mxu0 0
  %437 = vmatpush1.bf16.msra.mxu0 0
  %438 = vmatprep.subr.bf16.mxu0 0
  %439 = vmatpush1.bf16.msra.mxu0 0
  %440 = vmatprep.subr.bf16.mxu0 0
  %441 = vmatpush1.bf16.msra.mxu0 0
  %442 = vmatprep.subr.bf16.mxu0 0
  %443 = vmatpush1.bf16.msra.mxu0 0
  %444 = vmatprep.subr.bf16.mxu0 0
  %445 = vmatpush1.bf16.msra.mxu0 0
  %446 = vmatprep.subr.bf16.mxu0 0
  %447 = vmatpush1.bf16.msra.mxu0 0
  %448 = vmatprep.subr.bf16.mxu0 0
  %449 = vmatpush1.bf16.msra.mxu0 0
  %450 = vmatprep.subr.bf16.mxu0 0
  %451 = vmatpush1.bf16.msra.mxu0 0
  %452 = vmatprep.subr.bf16.mxu0 0
  %453 = vmatpush1.bf16.msra.mxu0 0
  %454 = vmatprep.subr.bf16.mxu0 0
  %455 = vmatpush1.bf16.msra.mxu0 0
  %456 = vmatprep.subr.bf16.mxu0 0
  %457 = vmatpush1.bf16.msra.mxu0 0
  %458 = vmatprep.subr.bf16.mxu0 0
  %459 = vmatpush1.bf16.msra.mxu0 0
  %460 = vmatprep.subr.bf16.mxu0 0
  %461 = vmatpush1.bf16.msra.mxu0 0
  %462 = vmatprep.mubr.bf16.mxu0 0
  %463 = vmatmul.mubr.bf16.gmra.mrb[0].mxu0 %v383
  %v464 = vpop.f32.mrb[0].mxu0
  %v465 = vadd.f32 %v368, %v464
  %v466 = vpop.f32.mrb[0].mxu0
  %v467 = vpop.f32.mrb[0].mxu0
  %v468 = vadd.f32 %v368, %v467
  %v469 = vpop.f32.mrb[0].mxu0
  %470 = vmatprep.mubr.bf16.mxu0 0
  %471 = vmatmul.mubr.bf16.gmra.mrb[0].mxu0 %v386
  %v472 = vpop.f32.mrb[0].mxu0
  %v473 = vadd.f32 %v368, %v472
  %v474 = vpop.f32.mrb[0].mxu0
  %v475 = vpop.f32.mrb[0].mxu0
  %v476 = vadd.f32 %v368, %v475
  %v477 = vpop.f32.mrb[0].mxu0
  %478 = vmatprep.mubr.bf16.mxu0 0
  %479 = vmatmul.mubr.bf16.gmra.mrb[0].mxu0 %v389
  %v480 = vpop.f32.mrb[0].mxu0
  %v481 = vadd.f32 %v368, %v480
  %v482 = vpop.f32.mrb[0].mxu0
  %v483 = vpop.f32.mrb[0].mxu0
  %v484 = vadd.f32 %v368, %v483
  %v485 = vpop.f32.mrb[0].mxu0
  %486 = vmatprep.mubr.bf16.mxu0 0
  %487 = vmatmul.mubr.bf16.gmra.mrb[0].mxu0 %v392
  %v488 = vpop.f32.mrb[0].mxu0
  %v489 = vadd.f32 %v368, %v488
  %v490 = vpop.f32.mrb[0].mxu0
  %v491 = vpop.f32.mrb[0].mxu0
  %v492 = vadd.f32 %v368, %v491
  %v493 = vpop.f32.mrb[0].mxu0
  %494 = vmatprep.mubr.bf16.mxu0 0
  %495 = vmatmul.mubr.bf16.gmra.mrb[0].mxu0 %v395
  %v496 = vpop.f32.mrb[0].mxu0
  %v497 = vadd.f32 %v368, %v496
  %v498 = vpop.f32.mrb[0].mxu0
  %v499 = vpop.f32.mrb[0].mxu0
  %v500 = vadd.f32 %v368, %v499
  %v501 = vpop.f32.mrb[0].mxu0
  %502 = vmatprep.mubr.bf16.mxu0 0
  %503 = vmatmul.mubr.bf16.gmra.mrb[0].mxu0 %v398
  %v504 = vpop.f32.mrb[0].mxu0
  %v505 = vadd.f32 %v368, %v504
  %v506 = vpop.f32.mrb[0].mxu0
  %v507 = vpop.f32.mrb[0].mxu0
  %v508 = vadd.f32 %v368, %v507
  %v509 = vpop.f32.mrb[0].mxu0
  %510 = vmatprep.mubr.bf16.mxu0 0
  %511 = vmatmul.mubr.bf16.gmra.mrb[0].mxu0 %v401
  %v512 = vpop.f32.mrb[0].mxu0
  %v513 = vadd.f32 %v368, %v512
  %v514 = vpop.f32.mrb[0].mxu0
  %v515 = vpop.f32.mrb[0].mxu0
  %v516 = vadd.f32 %v368, %v515
  %v517 = vpop.f32.mrb[0].mxu0
  %518 = vmatprep.mubr.bf16.mxu0 0
  %519 = vmatmul.mubr.bf16.gmra.mrb[0].mxu0 %v404
  %v520 = vpop.f32.mrb[0].mxu0
  %v521 = vadd.f32 %v368, %v520
  %v522 = vpop.f32.mrb[0].mxu0
  %v523 = vpop.f32.mrb[0].mxu0
  %v524 = vadd.f32 %v368, %v523
  %v525 = vpop.f32.mrb[0].mxu0
  %526 = vmatprep.mubr.bf16.mxu0 0
  %527 = vmatmul.mubr.bf16.gmra.mrb[0].mxu0 %v407
  %v528 = vpop.f32.mrb[0].mxu0
  %v529 = vadd.f32 %v368, %v528
  %v530 = vpop.f32.mrb[0].mxu0
  %v531 = vpop.f32.mrb[0].mxu0
  %v532 = vadd.f32 %v368, %v531
  %v533 = vpop.f32.mrb[0].mxu0
  %534 = vmatprep.mubr.bf16.mxu0 0
  %535 = vmatmul.mubr.bf16.gmra.mrb[0].mxu0 %v410
  %v536 = vpop.f32.mrb[0].mxu0
  %v537 = vadd.f32 %v368, %v536
  %v538 = vpop.f32.mrb[0].mxu0
  %v539 = vpop.f32.mrb[0].mxu0
  %v540 = vadd.f32 %v368, %v539
  %v541 = vpop.f32.mrb[0].mxu0
  %542 = vmatprep.mubr.bf16.mxu0 0
  %543 = vmatmul.mubr.bf16.gmra.mrb[0].mxu0 %v413
  %v544 = vpop.f32.mrb[0].mxu0
  %v545 = vadd.f32 %v368, %v544
  %v546 = vpop.f32.mrb[0].mxu0
  %v547 = vpop.f32.mrb[0].mxu0
  %v548 = vadd.f32 %v368, %v547
  %v549 = vpop.f32.mrb[0].mxu0
  %550 = vmatprep.mubr.bf16.mxu0 0
  %551 = vmatmul.mubr.bf16.gmra.mrb[0].mxu0 %v416
  %v552 = vpop.f32.mrb[0].mxu0
  %v553 = vadd.f32 %v368, %v552
  %v554 = vpop.f32.mrb[0].mxu0
  %v555 = vpop.f32.mrb[0].mxu0
  %v556 = vadd.f32 %v368, %v555
  %v557 = vpop.f32.mrb[0].mxu0
  %558 = vmatprep.mubr.bf16.mxu0 0
  %559 = vmatmul.mubr.bf16.gmra.mrb[0].mxu0 %v419
  %v560 = vpop.f32.mrb[0].mxu0
  %v561 = vadd.f32 %v368, %v560
  %v562 = vpop.f32.mrb[0].mxu0
  %v563 = vpop.f32.mrb[0].mxu0
  %v564 = vadd.f32 %v368, %v563
  %v565 = vpop.f32.mrb[0].mxu0
  %566 = vmatprep.mubr.bf16.mxu0 0
  %567 = vmatmul.mubr.bf16.gmra.mrb[0].mxu0 %v422
  %v568 = vpop.f32.mrb[0].mxu0
  %v569 = vadd.f32 %v368, %v568
  %v570 = vpop.f32.mrb[0].mxu0
  %v571 = vpop.f32.mrb[0].mxu0
  %v572 = vadd.f32 %v368, %v571
  %v573 = vpop.f32.mrb[0].mxu0
  %574 = vmatprep.mubr.bf16.mxu0 0
  %575 = vmatmul.mubr.bf16.gmra.mrb[0].mxu0 %v425
  %v576 = vpop.f32.mrb[0].mxu0
  %v577 = vadd.f32 %v368, %v576
  %v578 = vpop.f32.mrb[0].mxu0
  %v579 = vpop.f32.mrb[0].mxu0
  %v580 = vadd.f32 %v368, %v579
  %v581 = vpop.f32.mrb[0].mxu0
  %582 = vmatprep.mubr.bf16.mxu0 0
  %583 = vmatmul.mubr.bf16.gmra.mrb[0].mxu0 %v428
  %v584 = vpop.f32.mrb[0].mxu0
  %v585 = vadd.f32 %v368, %v584
  %v586 = vpop.f32.mrb[0].mxu0
  %v587 = vpop.f32.mrb[0].mxu0
  %v588 = vadd.f32 %v368, %v587
  %v589 = vpop.f32.mrb[0].mxu0
  %590 = vdwg.mxu0
  %v591 = vtanh.pop %v465
  %v592 = vtanh.pop %v468
  %v593 = vtanh.pop %v473
  %v594 = vtanh.pop %v476
  %v595 = vtanh.pop %v481
  %v596 = vtanh.pop %v484
  %v597 = vtanh.pop %v489
  %v598 = vtanh.pop %v492
  %v599 = vtanh.pop %v497
  %v600 = vtanh.pop %v500
  %v601 = vtanh.pop %v505
  %v602 = vtanh.pop %v508
  %v603 = vtanh.pop %v513
  %v604 = vtanh.pop %v516
  %v605 = vtanh.pop %v521
  %v606 = vtanh.pop %v524
  %v607 = vtanh.pop %v529
  %v608 = vtanh.pop %v532
  %v609 = vtanh.pop %v537
  %v610 = vtanh.pop %v540
  %v611 = vtanh.pop %v545
  %v612 = vtanh.pop %v548
  %v613 = vtanh.pop %v553
  %v614 = vtanh.pop %v556
  %v615 = vtanh.pop %v561
  %v616 = vtanh.pop %v564
  %v617 = vtanh.pop %v569
  %v618 = vtanh.pop %v572
  %v619 = vtanh.pop %v577
  %v620 = vtanh.pop %v580
  %v621 = vtanh.pop %v585
  %v622 = vtanh.pop %v588
  %v623 = vpack.c.bf16 %v592, %v591
  %v624 = vpack.c.bf16 %v594, %v593
  %v625 = vpack.c.bf16 %v596, %v595
  %v626 = vpack.c.bf16 %v598, %v597
  %v627 = vpack.c.bf16 %v600, %v599
  %v628 = vpack.c.bf16 %v602, %v601
  %v629 = vpack.c.bf16 %v604, %v603
  %v630 = vpack.c.bf16 %v606, %v605
  %v631 = vpack.c.bf16 %v608, %v607
  %v632 = vpack.c.bf16 %v610, %v609
  %v633 = vpack.c.bf16 %v612, %v611
  %v634 = vpack.c.bf16 %v614, %v613
  %v635 = vpack.c.bf16 %v616, %v615
  %v636 = vpack.c.bf16 %v618, %v617
  %v637 = vpack.c.bf16 %v620, %v619
  %v638 = vpack.c.bf16 %v622, %v621
  %v639 = vld [vmem:[%s5] sm:$0xf]
  %v640 = vld [vmem:[%s5 + $0x4] sm:$0xf]
  %v641 = vld [vmem:[%s5 + $0x8] sm:$0xf]
  %v642 = vld [vmem:[%s5 + $0xc] sm:$0xf]
  %v643 = vld [vmem:[%s6] sm:$0xf]
  %v644 = vld [vmem:[%s6 + $0x4] sm:$0xf]
  %v645 = vld [vmem:[%s6 + $0x8] sm:$0xf]
  %v646 = vld [vmem:[%s6 + $0xc] sm:$0xf]
  %v651 = vunpack.c.l.b16 %v643
  %v652 = vunpack.c.l.b16 %v644
  %v653 = vunpack.c.l.b16 %v645
  %v654 = vunpack.c.l.b16 %v646
  %v655 = vpack.c.b16 %v652, %v651
  %v656 = vpack.c.b16 %v654, %v653
  %v660 = vsel %vm101, %v623, 0
  %v663 = vsel %vm101, %v624, 0
  %v666 = vsel %vm101, %v625, 0
  %v669 = vsel %vm101, %v626, 0
  %v672 = vsel %vm101, %v627, 0
  %v675 = vsel %vm101, %v628, 0
  %v678 = vsel %vm101, %v629, 0
  %v681 = vsel %vm101, %v630, 0
  %v684 = vsel %vm101, %v631, 0
  %v687 = vsel %vm101, %v632, 0
  %v690 = vsel %vm101, %v633, 0
  %v693 = vsel %vm101, %v634, 0
  %v696 = vsel %vm101, %v635, 0
  %v699 = vsel %vm101, %v636, 0
  %v702 = vsel %vm101, %v637, 0
  %v705 = vsel %vm101, %v638, 0
  %707 = vmatprep.subr.bf16.mxu0 0
  %708 = vmatpush1.bf16.msra.mxu0 %v655
  %709 = vmatprep.subr.bf16.mxu0 0
  %710 = vmatpush1.bf16.msra.mxu0 %v656
  %711 = vmatprep.subr.bf16.mxu0 0
  %712 = vmatpush1.bf16.msra.mxu0 0
  %713 = vmatprep.subr.bf16.mxu0 0
  %714 = vmatpush1.bf16.msra.mxu0 0
  %715 = vmatprep.subr.bf16.mxu0 0
  %716 = vmatpush1.bf16.msra.mxu0 0
  %717 = vmatprep.subr.bf16.mxu0 0
  %718 = vmatpush1.bf16.msra.mxu0 0
  %719 = vmatprep.subr.bf16.mxu0 0
  %720 = vmatpush1.bf16.msra.mxu0 0
  %721 = vmatprep.subr.bf16.mxu0 0
  %722 = vmatpush1.bf16.msra.mxu0 0
  %723 = vmatprep.subr.bf16.mxu0 0
  %724 = vmatpush1.bf16.msra.mxu0 0
  %725 = vmatprep.subr.bf16.mxu0 0
  %726 = vmatpush1.bf16.msra.mxu0 0
  %727 = vmatprep.subr.bf16.mxu0 0
  %728 = vmatpush1.bf16.msra.mxu0 0
  %729 = vmatprep.subr.bf16.mxu0 0
  %730 = vmatpush1.bf16.msra.mxu0 0
  %731 = vmatprep.subr.bf16.mxu0 0
  %732 = vmatpush1.bf16.msra.mxu0 0
  %733 = vmatprep.subr.bf16.mxu0 0
  %734 = vmatpush1.bf16.msra.mxu0 0
  %735 = vmatprep.subr.bf16.mxu0 0
  %736 = vmatpush1.bf16.msra.mxu0 0
  %737 = vmatprep.subr.bf16.mxu0 0
  %738 = vmatpush1.bf16.msra.mxu0 0
  %739 = vmatprep.mubr.bf16.mxu0 0
  %740 = vmatmul.mubr.bf16.gmra.mrb[0].mxu0 %v660
  %v741 = vpop.f32.mrb[0].mxu0
  %v742 = vadd.f32 0.0, %v741
  %v743 = vpop.f32.mrb[0].mxu0
  %v744 = vpop.f32.mrb[0].mxu0
  %v745 = vadd.f32 0.0, %v744
  %v746 = vpop.f32.mrb[0].mxu0
  %747 = vmatprep.mubr.bf16.mxu0 0
  %748 = vmatmul.mubr.bf16.gmra.mrb[0].mxu0 %v663
  %v749 = vpop.f32.mrb[0].mxu0
  %v750 = vadd.f32 0.0, %v749
  %v751 = vpop.f32.mrb[0].mxu0
  %v752 = vpop.f32.mrb[0].mxu0
  %v753 = vadd.f32 0.0, %v752
  %v754 = vpop.f32.mrb[0].mxu0
  %755 = vmatprep.mubr.bf16.mxu0 0
  %756 = vmatmul.mubr.bf16.gmra.mrb[0].mxu0 %v666
  %v757 = vpop.f32.mrb[0].mxu0
  %v758 = vadd.f32 0.0, %v757
  %v759 = vpop.f32.mrb[0].mxu0
  %v760 = vpop.f32.mrb[0].mxu0
  %v761 = vadd.f32 0.0, %v760
  %v762 = vpop.f32.mrb[0].mxu0
  %763 = vmatprep.mubr.bf16.mxu0 0
  %764 = vmatmul.mubr.bf16.gmra.mrb[0].mxu0 %v669
  %v765 = vpop.f32.mrb[0].mxu0
  %v766 = vadd.f32 0.0, %v765
  %v767 = vpop.f32.mrb[0].mxu0
  %v768 = vpop.f32.mrb[0].mxu0
  %v769 = vadd.f32 0.0, %v768
  %v770 = vpop.f32.mrb[0].mxu0
  %771 = vmatprep.mubr.bf16.mxu0 0
  %772 = vmatmul.mubr.bf16.gmra.mrb[0].mxu0 %v672
  %v773 = vpop.f32.mrb[0].mxu0
  %v774 = vadd.f32 0.0, %v773
  %v775 = vpop.f32.mrb[0].mxu0
  %v776 = vpop.f32.mrb[0].mxu0
  %v777 = vadd.f32 0.0, %v776
  %v778 = vpop.f32.mrb[0].mxu0
  %779 = vmatprep.mubr.bf16.mxu0 0
  %780 = vmatmul.mubr.bf16.gmra.mrb[0].mxu0 %v675
  %v781 = vpop.f32.mrb[0].mxu0
  %v782 = vadd.f32 0.0, %v781
  %v783 = vpop.f32.mrb[0].mxu0
  %v784 = vpop.f32.mrb[0].mxu0
  %v785 = vadd.f32 0.0, %v784
  %v786 = vpop.f32.mrb[0].mxu0
  %787 = vmatprep.mubr.bf16.mxu0 0
  %788 = vmatmul.mubr.bf16.gmra.mrb[0].mxu0 %v678
  %v789 = vpop.f32.mrb[0].mxu0
  %v790 = vadd.f32 0.0, %v789
  %v791 = vpop.f32.mrb[0].mxu0
  %v792 = vpop.f32.mrb[0].mxu0
  %v793 = vadd.f32 0.0, %v792
  %v794 = vpop.f32.mrb[0].mxu0
  %795 = vmatprep.mubr.bf16.mxu0 0
  %796 = vmatmul.mubr.bf16.gmra.mrb[0].mxu0 %v681
  %v797 = vpop.f32.mrb[0].mxu0
  %v798 = vadd.f32 0.0, %v797
  %v799 = vpop.f32.mrb[0].mxu0
  %v800 = vpop.f32.mrb[0].mxu0
  %v801 = vadd.f32 0.0, %v800
  %v802 = vpop.f32.mrb[0].mxu0
  %803 = vmatprep.mubr.bf16.mxu0 0
  %804 = vmatmul.mubr.bf16.gmra.mrb[0].mxu0 %v684
  %v805 = vpop.f32.mrb[0].mxu0
  %v806 = vadd.f32 0.0, %v805
  %v807 = vpop.f32.mrb[0].mxu0
  %v808 = vpop.f32.mrb[0].mxu0
  %v809 = vadd.f32 0.0, %v808
  %v810 = vpop.f32.mrb[0].mxu0
  %811 = vmatprep.mubr.bf16.mxu0 0
  %812 = vmatmul.mubr.bf16.gmra.mrb[0].mxu0 %v687
  %v813 = vpop.f32.mrb[0].mxu0
  %v814 = vadd.f32 0.0, %v813
  %v815 = vpop.f32.mrb[0].mxu0
  %v816 = vpop.f32.mrb[0].mxu0
  %v817 = vadd.f32 0.0, %v816
  %v818 = vpop.f32.mrb[0].mxu0
  %819 = vmatprep.mubr.bf16.mxu0 0
  %820 = vmatmul.mubr.bf16.gmra.mrb[0].mxu0 %v690
  %v821 = vpop.f32.mrb[0].mxu0
  %v822 = vadd.f32 0.0, %v821
  %v823 = vpop.f32.mrb[0].mxu0
  %v824 = vpop.f32.mrb[0].mxu0
  %v825 = vadd.f32 0.0, %v824
  %v826 = vpop.f32.mrb[0].mxu0
  %827 = vmatprep.mubr.bf16.mxu0 0
  %828 = vmatmul.mubr.bf16.gmra.mrb[0].mxu0 %v693
  %v829 = vpop.f32.mrb[0].mxu0
  %v830 = vadd.f32 0.0, %v829
  %v831 = vpop.f32.mrb[0].mxu0
  %v832 = vpop.f32.mrb[0].mxu0
  %v833 = vadd.f32 0.0, %v832
  %v834 = vpop.f32.mrb[0].mxu0
  %835 = vmatprep.mubr.bf16.mxu0 0
  %836 = vmatmul.mubr.bf16.gmra.mrb[0].mxu0 %v696
  %v837 = vpop.f32.mrb[0].mxu0
  %v838 = vadd.f32 0.0, %v837
  %v839 = vpop.f32.mrb[0].mxu0
  %v840 = vpop.f32.mrb[0].mxu0
  %v841 = vadd.f32 0.0, %v840
  %v842 = vpop.f32.mrb[0].mxu0
  %843 = vmatprep.mubr.bf16.mxu0 0
  %844 = vmatmul.mubr.bf16.gmra.mrb[0].mxu0 %v699
  %v845 = vpop.f32.mrb[0].mxu0
  %v846 = vadd.f32 0.0, %v845
  %v847 = vpop.f32.mrb[0].mxu0
  %v848 = vpop.f32.mrb[0].mxu0
  %v849 = vadd.f32 0.0, %v848
  %v850 = vpop.f32.mrb[0].mxu0
  %851 = vmatprep.mubr.bf16.mxu0 0
  %852 = vmatmul.mubr.bf16.gmra.mrb[0].mxu0 %v702
  %v853 = vpop.f32.mrb[0].mxu0
  %v854 = vadd.f32 0.0, %v853
  %v855 = vpop.f32.mrb[0].mxu0
  %v856 = vpop.f32.mrb[0].mxu0
  %v857 = vadd.f32 0.0, %v856
  %v858 = vpop.f32.mrb[0].mxu0
  %859 = vmatprep.mubr.bf16.mxu0 0
  %860 = vmatmul.mubr.bf16.gmra.mrb[0].mxu0 %v705
  %v861 = vpop.f32.mrb[0].mxu0
  %v862 = vadd.f32 0.0, %v861
  %v863 = vpop.f32.mrb[0].mxu0
  %v864 = vpop.f32.mrb[0].mxu0
  %v865 = vadd.f32 0.0, %v864
  %v866 = vpop.f32.mrb[0].mxu0
  %867 = vdwg.mxu0
  %v872 = vunpack.c.l.b16 %v639
  %v873 = vunpack.c.l.b16 %v640
  %v874 = vunpack.c.l.b16 %v641
  %v875 = vunpack.c.l.b16 %v642
  %v876 = vpack.c.b16 %v873, %v872
  %v877 = vpack.c.b16 %v875, %v874
  %880 = vmatprep.subr.bf16.mxu0 0
  %881 = vmatpush1.bf16.msra.mxu0 %v876
  %882 = vmatprep.subr.bf16.mxu0 0
  %883 = vmatpush1.bf16.msra.mxu0 %v877
  %884 = vmatprep.subr.bf16.mxu0 0
  %885 = vmatpush1.bf16.msra.mxu0 0
  %886 = vmatprep.subr.bf16.mxu0 0
  %887 = vmatpush1.bf16.msra.mxu0 0
  %888 = vmatprep.subr.bf16.mxu0 0
  %889 = vmatpush1.bf16.msra.mxu0 0
  %890 = vmatprep.subr.bf16.mxu0 0
  %891 = vmatpush1.bf16.msra.mxu0 0
  %892 = vmatprep.subr.bf16.mxu0 0
  %893 = vmatpush1.bf16.msra.mxu0 0
  %894 = vmatprep.subr.bf16.mxu0 0
  %895 = vmatpush1.bf16.msra.mxu0 0
  %896 = vmatprep.subr.bf16.mxu0 0
  %897 = vmatpush1.bf16.msra.mxu0 0
  %898 = vmatprep.subr.bf16.mxu0 0
  %899 = vmatpush1.bf16.msra.mxu0 0
  %900 = vmatprep.subr.bf16.mxu0 0
  %901 = vmatpush1.bf16.msra.mxu0 0
  %902 = vmatprep.subr.bf16.mxu0 0
  %903 = vmatpush1.bf16.msra.mxu0 0
  %904 = vmatprep.subr.bf16.mxu0 0
  %905 = vmatpush1.bf16.msra.mxu0 0
  %906 = vmatprep.subr.bf16.mxu0 0
  %907 = vmatpush1.bf16.msra.mxu0 0
  %908 = vmatprep.subr.bf16.mxu0 0
  %909 = vmatpush1.bf16.msra.mxu0 0
  %910 = vmatprep.subr.bf16.mxu0 0
  %911 = vmatpush1.bf16.msra.mxu0 0
  %912 = vmatprep.mubr.bf16.mxu0 0
  %913 = vmatmul.mubr.bf16.gmra.mrb[0].mxu0 %v383
  %v914 = vpop.f32.mrb[0].mxu0
  %v915 = vadd.f32 %v742, %v914
  %v916 = vpop.f32.mrb[0].mxu0
  %v917 = vpop.f32.mrb[0].mxu0
  %v918 = vadd.f32 %v745, %v917
  %v919 = vpop.f32.mrb[0].mxu0
  %920 = vmatprep.mubr.bf16.mxu0 0
  %921 = vmatmul.mubr.bf16.gmra.mrb[0].mxu0 %v386
  %v922 = vpop.f32.mrb[0].mxu0
  %v923 = vadd.f32 %v750, %v922
  %v924 = vpop.f32.mrb[0].mxu0
  %v925 = vpop.f32.mrb[0].mxu0
  %v926 = vadd.f32 %v753, %v925
  %v927 = vpop.f32.mrb[0].mxu0
  %928 = vmatprep.mubr.bf16.mxu0 0
  %929 = vmatmul.mubr.bf16.gmra.mrb[0].mxu0 %v389
  %v930 = vpop.f32.mrb[0].mxu0
  %v931 = vadd.f32 %v758, %v930
  %v932 = vpop.f32.mrb[0].mxu0
  %v933 = vpop.f32.mrb[0].mxu0
  %v934 = vadd.f32 %v761, %v933
  %v935 = vpop.f32.mrb[0].mxu0
  %936 = vmatprep.mubr.bf16.mxu0 0
  %937 = vmatmul.mubr.bf16.gmra.mrb[0].mxu0 %v392
  %v938 = vpop.f32.mrb[0].mxu0
  %v939 = vadd.f32 %v766, %v938
  %v940 = vpop.f32.mrb[0].mxu0
  %v941 = vpop.f32.mrb[0].mxu0
  %v942 = vadd.f32 %v769, %v941
  %v943 = vpop.f32.mrb[0].mxu0
  %944 = vmatprep.mubr.bf16.mxu0 0
  %945 = vmatmul.mubr.bf16.gmra.mrb[0].mxu0 %v395
  %v946 = vpop.f32.mrb[0].mxu0
  %v947 = vadd.f32 %v774, %v946
  %v948 = vpop.f32.mrb[0].mxu0
  %v949 = vpop.f32.mrb[0].mxu0
  %v950 = vadd.f32 %v777, %v949
  %v951 = vpop.f32.mrb[0].mxu0
  %952 = vmatprep.mubr.bf16.mxu0 0
  %953 = vmatmul.mubr.bf16.gmra.mrb[0].mxu0 %v398
  %v954 = vpop.f32.mrb[0].mxu0
  %v955 = vadd.f32 %v782, %v954
  %v956 = vpop.f32.mrb[0].mxu0
  %v957 = vpop.f32.mrb[0].mxu0
  %v958 = vadd.f32 %v785, %v957
  %v959 = vpop.f32.mrb[0].mxu0
  %960 = vmatprep.mubr.bf16.mxu0 0
  %961 = vmatmul.mubr.bf16.gmra.mrb[0].mxu0 %v401
  %v962 = vpop.f32.mrb[0].mxu0
  %v963 = vadd.f32 %v790, %v962
  %v964 = vpop.f32.mrb[0].mxu0
  %v965 = vpop.f32.mrb[0].mxu0
  %v966 = vadd.f32 %v793, %v965
  %v967 = vpop.f32.mrb[0].mxu0
  %968 = vmatprep.mubr.bf16.mxu0 0
  %969 = vmatmul.mubr.bf16.gmra.mrb[0].mxu0 %v404
  %v970 = vpop.f32.mrb[0].mxu0
  %v971 = vadd.f32 %v798, %v970
  %v972 = vpop.f32.mrb[0].mxu0
  %v973 = vpop.f32.mrb[0].mxu0
  %v974 = vadd.f32 %v801, %v973
  %v975 = vpop.f32.mrb[0].mxu0
  %976 = vmatprep.mubr.bf16.mxu0 0
  %977 = vmatmul.mubr.bf16.gmra.mrb[0].mxu0 %v407
  %v978 = vpop.f32.mrb[0].mxu0
  %v979 = vadd.f32 %v806, %v978
  %v980 = vpop.f32.mrb[0].mxu0
  %v981 = vpop.f32.mrb[0].mxu0
  %v982 = vadd.f32 %v809, %v981
  %v983 = vpop.f32.mrb[0].mxu0
  %984 = vmatprep.mubr.bf16.mxu0 0
  %985 = vmatmul.mubr.bf16.gmra.mrb[0].mxu0 %v410
  %v986 = vpop.f32.mrb[0].mxu0
  %v987 = vadd.f32 %v814, %v986
  %v988 = vpop.f32.mrb[0].mxu0
  %v989 = vpop.f32.mrb[0].mxu0
  %v990 = vadd.f32 %v817, %v989
  %v991 = vpop.f32.mrb[0].mxu0
  %992 = vmatprep.mubr.bf16.mxu0 0
  %993 = vmatmul.mubr.bf16.gmra.mrb[0].mxu0 %v413
  %v994 = vpop.f32.mrb[0].mxu0
  %v995 = vadd.f32 %v822, %v994
  %v996 = vpop.f32.mrb[0].mxu0
  %v997 = vpop.f32.mrb[0].mxu0
  %v998 = vadd.f32 %v825, %v997
  %v999 = vpop.f32.mrb[0].mxu0
  %1000 = vmatprep.mubr.bf16.mxu0 0
  %1001 = vmatmul.mubr.bf16.gmra.mrb[0].mxu0 %v416
  %v1002 = vpop.f32.mrb[0].mxu0
  %v1003 = vadd.f32 %v830, %v1002
  %v1004 = vpop.f32.mrb[0].mxu0
  %v1005 = vpop.f32.mrb[0].mxu0
  %v1006 = vadd.f32 %v833, %v1005
  %v1007 = vpop.f32.mrb[0].mxu0
  %1008 = vmatprep.mubr.bf16.mxu0 0
  %1009 = vmatmul.mubr.bf16.gmra.mrb[0].mxu0 %v419
  %v1010 = vpop.f32.mrb[0].mxu0
  %v1011 = vadd.f32 %v838, %v1010
  %v1012 = vpop.f32.mrb[0].mxu0
  %v1013 = vpop.f32.mrb[0].mxu0
  %v1014 = vadd.f32 %v841, %v1013
  %v1015 = vpop.f32.mrb[0].mxu0
  %1016 = vmatprep.mubr.bf16.mxu0 0
  %1017 = vmatmul.mubr.bf16.gmra.mrb[0].mxu0 %v422
  %v1018 = vpop.f32.mrb[0].mxu0
  %v1019 = vadd.f32 %v846, %v1018
  %v1020 = vpop.f32.mrb[0].mxu0
  %v1021 = vpop.f32.mrb[0].mxu0
  %v1022 = vadd.f32 %v849, %v1021
  %v1023 = vpop.f32.mrb[0].mxu0
  %1024 = vmatprep.mubr.bf16.mxu0 0
  %1025 = vmatmul.mubr.bf16.gmra.mrb[0].mxu0 %v425
  %v1026 = vpop.f32.mrb[0].mxu0
  %v1027 = vadd.f32 %v854, %v1026
  %v1028 = vpop.f32.mrb[0].mxu0
  %v1029 = vpop.f32.mrb[0].mxu0
  %v1030 = vadd.f32 %v857, %v1029
  %v1031 = vpop.f32.mrb[0].mxu0
  %1032 = vmatprep.mubr.bf16.mxu0 0
  %1033 = vmatmul.mubr.bf16.gmra.mrb[0].mxu0 %v428
  %v1034 = vpop.f32.mrb[0].mxu0
  %v1035 = vadd.f32 %v862, %v1034
  %v1036 = vpop.f32.mrb[0].mxu0
  %v1037 = vpop.f32.mrb[0].mxu0
  %v1038 = vadd.f32 %v865, %v1037
  %v1039 = vpop.f32.mrb[0].mxu0
  %1040 = vdwg.mxu0
  %v1041 = vld [vmem:[%s7] sm:$0x1]
  %v1043 = vlaneseq
  %v1044 = vshrl.u32 %v1043, 7
  %v1045 = vsub.s32 0, %v1044
  %v1046 = vrot.slane %v1041, %v1045
  %v1048 = vadd.f32 %v915, %v1046
  %v1049 = vadd.f32 %v918, %v1046
  %v1050 = vadd.f32 %v923, %v1046
  %v1051 = vadd.f32 %v926, %v1046
  %v1052 = vadd.f32 %v931, %v1046
  %v1053 = vadd.f32 %v934, %v1046
  %v1054 = vadd.f32 %v939, %v1046
  %v1055 = vadd.f32 %v942, %v1046
  %v1056 = vadd.f32 %v947, %v1046
  %v1057 = vadd.f32 %v950, %v1046
  %v1058 = vadd.f32 %v955, %v1046
  %v1059 = vadd.f32 %v958, %v1046
  %v1060 = vadd.f32 %v963, %v1046
  %v1061 = vadd.f32 %v966, %v1046
  %v1062 = vadd.f32 %v971, %v1046
  %v1063 = vadd.f32 %v974, %v1046
  %v1064 = vadd.f32 %v979, %v1046
  %v1065 = vadd.f32 %v982, %v1046
  %v1066 = vadd.f32 %v987, %v1046
  %v1067 = vadd.f32 %v990, %v1046
  %v1068 = vadd.f32 %v995, %v1046
  %v1069 = vadd.f32 %v998, %v1046
  %v1070 = vadd.f32 %v1003, %v1046
  %v1071 = vadd.f32 %v1006, %v1046
  %v1072 = vadd.f32 %v1011, %v1046
  %v1073 = vadd.f32 %v1014, %v1046
  %v1074 = vadd.f32 %v1019, %v1046
  %v1075 = vadd.f32 %v1022, %v1046
  %v1076 = vadd.f32 %v1027, %v1046
  %v1077 = vadd.f32 %v1030, %v1046
  %v1078 = vadd.f32 %v1035, %v1046
  %v1079 = vadd.f32 %v1038, %v1046
  %v1080 = vpack.c.bf16 %v1049, %v1048
  %v1081 = vpack.c.bf16 %v1051, %v1050
  %v1082 = vpack.c.bf16 %v1053, %v1052
  %v1083 = vpack.c.bf16 %v1055, %v1054
  %v1084 = vpack.c.bf16 %v1057, %v1056
  %v1085 = vpack.c.bf16 %v1059, %v1058
  %v1086 = vpack.c.bf16 %v1061, %v1060
  %v1087 = vpack.c.bf16 %v1063, %v1062
  %v1088 = vpack.c.bf16 %v1065, %v1064
  %v1089 = vpack.c.bf16 %v1067, %v1066
  %v1090 = vpack.c.bf16 %v1069, %v1068
  %v1091 = vpack.c.bf16 %v1071, %v1070
  %v1092 = vpack.c.bf16 %v1073, %v1072
  %v1093 = vpack.c.bf16 %v1075, %v1074
  %v1094 = vpack.c.bf16 %v1077, %v1076
  %v1095 = vpack.c.bf16 %v1079, %v1078
  %v1112 = vunpack.c.l.b16 %v1080
  %v1113 = vunpack.c.h.b16 %v1080
  %v1114 = vunpack.c.l.b16 %v1081
  %v1115 = vunpack.c.h.b16 %v1081
  %v1116 = vunpack.c.l.b16 %v1082
  %v1117 = vunpack.c.h.b16 %v1082
  %v1118 = vunpack.c.l.b16 %v1083
  %v1119 = vunpack.c.h.b16 %v1083
  %v1120 = vunpack.c.l.b16 %v1084
  %v1121 = vunpack.c.h.b16 %v1084
  %v1122 = vunpack.c.l.b16 %v1085
  %v1123 = vunpack.c.h.b16 %v1085
  %v1124 = vunpack.c.l.b16 %v1086
  %v1125 = vunpack.c.h.b16 %v1086
  %v1126 = vunpack.c.l.b16 %v1087
  %v1127 = vunpack.c.h.b16 %v1087
  %v1128 = vunpack.c.l.b16 %v1088
  %v1129 = vunpack.c.h.b16 %v1088
  %v1130 = vunpack.c.l.b16 %v1089
  %v1131 = vunpack.c.h.b16 %v1089
  %v1132 = vunpack.c.l.b16 %v1090
  %v1133 = vunpack.c.h.b16 %v1090
  %v1134 = vunpack.c.l.b16 %v1091
  %v1135 = vunpack.c.h.b16 %v1091
  %v1136 = vunpack.c.l.b16 %v1092
  %v1137 = vunpack.c.h.b16 %v1092
  %v1138 = vunpack.c.l.b16 %v1093
  %v1139 = vunpack.c.h.b16 %v1093
  %v1140 = vunpack.c.l.b16 %v1094
  %v1141 = vunpack.c.h.b16 %v1094
  %v1142 = vunpack.c.l.b16 %v1095
  %v1143 = vunpack.c.h.b16 %v1095
  %v1144 = vpack.c.b16 %v1112, %v1112
  %v1145 = vpack.c.b16 %v1113, %v1113
  %v1146 = vpack.c.b16 %v1114, %v1114
  %v1147 = vpack.c.b16 %v1115, %v1115
  %v1148 = vpack.c.b16 %v1116, %v1116
  %v1149 = vpack.c.b16 %v1117, %v1117
  %v1150 = vpack.c.b16 %v1118, %v1118
  %v1151 = vpack.c.b16 %v1119, %v1119
  %v1152 = vpack.c.b16 %v1120, %v1120
  %v1153 = vpack.c.b16 %v1121, %v1121
  %v1154 = vpack.c.b16 %v1122, %v1122
  %v1155 = vpack.c.b16 %v1123, %v1123
  %v1156 = vpack.c.b16 %v1124, %v1124
  %v1157 = vpack.c.b16 %v1125, %v1125
  %v1158 = vpack.c.b16 %v1126, %v1126
  %v1159 = vpack.c.b16 %v1127, %v1127
  %v1160 = vpack.c.b16 %v1128, %v1128
  %v1161 = vpack.c.b16 %v1129, %v1129
  %v1162 = vpack.c.b16 %v1130, %v1130
  %v1163 = vpack.c.b16 %v1131, %v1131
  %v1164 = vpack.c.b16 %v1132, %v1132
  %v1165 = vpack.c.b16 %v1133, %v1133
  %v1166 = vpack.c.b16 %v1134, %v1134
  %v1167 = vpack.c.b16 %v1135, %v1135
  %v1168 = vpack.c.b16 %v1136, %v1136
  %v1169 = vpack.c.b16 %v1137, %v1137
  %v1170 = vpack.c.b16 %v1138, %v1138
  %v1171 = vpack.c.b16 %v1139, %v1139
  %v1172 = vpack.c.b16 %v1140, %v1140
  %v1173 = vpack.c.b16 %v1141, %v1141
  %v1174 = vpack.c.b16 %v1142, %v1142
  %v1175 = vpack.c.b16 %v1143, %v1143
  %1208 = vst [vmem:[%s8] sm:$0xf] %v1144
  %1209 = vst [vmem:[%s8 + $0x4] sm:$0xf] %v1145
  %1210 = vst [vmem:[%s8 + $0x8] sm:$0xf] %v1146
  %1211 = vst [vmem:[%s8 + $0xc] sm:$0xf] %v1147
  %1212 = vst [vmem:[%s8 + $0x10] sm:$0xf] %v1148
  %1213 = vst [vmem:[%s8 + $0x14] sm:$0xf] %v1149
  %1214 = vst [vmem:[%s8 + $0x18] sm:$0xf] %v1150
  %1215 = vst [vmem:[%s8 + $0x1c] sm:$0xf] %v1151
  %1216 = vst [vmem:[%s8 + $0x20] sm:$0xf] %v1152
  %1217 = vst [vmem:[%s8 + $0x24] sm:$0xf] %v1153
  %1218 = vst [vmem:[%s8 + $0x28] sm:$0xf] %v1154
  %1219 = vst [vmem:[%s8 + $0x2c] sm:$0xf] %v1155
  %1220 = vst [vmem:[%s8 + $0x30] sm:$0xf] %v1156
  %1221 = vst [vmem:[%s8 + $0x34] sm:$0xf] %v1157
  %1222 = vst [vmem:[%s8 + $0x38] sm:$0xf] %v1158
  %1223 = vst [vmem:[%s8 + $0x3c] sm:$0xf] %v1159
  %1224 = vst [vmem:[%s8 + $0x40] sm:$0xf] %v1160
  %1225 = vst [vmem:[%s8 + $0x44] sm:$0xf] %v1161
  %1226 = vst [vmem:[%s8 + $0x48] sm:$0xf] %v1162
  %1227 = vst [vmem:[%s8 + $0x4c] sm:$0xf] %v1163
  %1228 = vst [vmem:[%s8 + $0x50] sm:$0xf] %v1164
  %1229 = vst [vmem:[%s8 + $0x54] sm:$0xf] %v1165
  %1230 = vst [vmem:[%s8 + $0x58] sm:$0xf] %v1166
  %1231 = vst [vmem:[%s8 + $0x5c] sm:$0xf] %v1167
  %1232 = vst [vmem:[%s8 + $0x60] sm:$0xf] %v1168
  %1233 = vst [vmem:[%s8 + $0x64] sm:$0xf] %v1169
  %1234 = vst [vmem:[%s8 + $0x68] sm:$0xf] %v1170
  %1235 = vst [vmem:[%s8 + $0x6c] sm:$0xf] %v1171
  %1236 = vst [vmem:[%s8 + $0x70] sm:$0xf] %v1172
  %1237 = vst [vmem:[%s8 + $0x74] sm:$0xf] %v1173
  %1238 = vst [vmem:[%s8 + $0x78] sm:$0xf] %v1174
  %1239 = vst [vmem:[%s8 + $0x7c] sm:$0xf] %v1175
  // Predicated region
  $region34: #{encoding_forward.1} parent=0 // pred_check
    _
  $region35: #{encoding_forward.1} parent=0 // pred_check_branch
    %1241 = sbr.rel (0) target = $region37
  $region36: #{encoding_forward.1} parent=0 // pred_region
    _
  $region37: #{encoding_forward.1} parent=0 // pred_fallthru
    _
  // Predicated region
  $region38: #{encoding_forward.1} parent=0 // pred_check
    _
  $region39: #{encoding_forward.1} parent=0 // pred_check_branch
    %1243 = sbr.rel (0) target = $region41
  $region40: #{encoding_forward.1} parent=0 // pred_region
    _
  $region41: #{encoding_forward.1} parent=0 // pred_fallthru
    _

</llo_original>
